<compile_context>
chip_gen: v7x
topology: tpu7x:2x2x1
jax: 0.10.0
libtpu: 0.0.40
codegen_flags: <defaults>
</compile_context>

<pallas_src>
import functools

import jax
import jax.numpy as jnp
from jax.experimental import pallas as pl
from jax.experimental.pallas import tpu as pltpu


def _round_up(x, m):
    return (x + m - 1) // m * m


def _ce_label_smooth_kernel(x_ref, t_ref, out_ref, *, epsilon, num_classes,
                            batch, tile_m):
    i = pl.program_id(0)

    x = x_ref[...].astype(jnp.float32)              # (TM, C); cast in-kernel
    tm, c = x.shape

    # Row validity for the ragged last batch block (data there is undefined).
    row_idx = jax.lax.broadcasted_iota(jnp.int32, (tm, 1), 0) + i * tile_m
    valid_r = row_idx < batch                       # (TM, 1) bool

    # Numerically stable log-softmax pieces, log_probs never materialized.
    m = jnp.max(x, axis=1, keepdims=True)           # (TM, 1)   XLU
    z = x - m                                       # (TM, C)   1 VALU op/elem
    lse = jnp.log(jnp.sum(jnp.exp(z), axis=1, keepdims=True))   # (TM, 1) EUP+XLU

    # Fused one-hot extraction: z at the target class via a masked row reduce.
    t = t_ref[...]                                  # (TM, 1) int32 labels
    cls_idx = jax.lax.broadcasted_iota(jnp.int32, (tm, c), 1)
    z_t = jnp.sum(jnp.where(cls_idx == t, z, 0.0), axis=1, keepdims=True)
    z_sum = jnp.sum(z, axis=1, keepdims=True)       # (TM, 1)   XLU

    # Per-row smoothed CE with lse folded algebraically:
    #   -[(1-eps)*(z_t - lse) + (eps/C)*(sum_c z - C*lse)]
    row_loss = -((1.0 - epsilon) * (z_t - lse)
                 + (epsilon / num_classes) * (z_sum - num_classes * lse))
    # Row-level mask (select, so NaN/inf garbage in padded rows cannot leak).
    row_loss = jnp.where(valid_r, row_loss, 0.0)

    partial = jnp.sum(row_loss)

    # Lane-dense (1, 8, 128) per-tile partial-sum block (unmasked stores).
    out_ref[...] = jnp.full(out_ref.shape, partial, dtype=jnp.float32)


def cross_entropy_label_smooth(inputs, targets, num_classes, epsilon=0.1,
                               tile_m=None):
    """inputs: (B, num_classes) float logits (any float dtype);
    targets: (B,) int class labels. Returns the scalar smoothed CE loss.

    Note: out-of-range / negative labels contribute 0 to the target term
    (consistent with jax.nn.one_hot / torch scatter of an absent index)."""
    B, C = inputs.shape
    assert C == num_classes, "inputs last dim must equal num_classes"

    itemsize = jnp.dtype(inputs.dtype).itemsize

    if tile_m is None:
        # VMEM working set per row:
        #   2 double-buffered native-dtype input tiles + ~4 f32 intermediates.
        # Budget ~22 MiB -> fits v7x's 32 MiB scoped VMEM; plenty on v5e/v6e.
        budget = 22 * 1024 * 1024
        per_row_bytes = 2 * C * itemsize + 4 * C * 4
        tile_m = max(8, (budget // per_row_bytes) // 8 * 8)
        if B > 8:
            # Keep >= 2 grid steps so v7x's two TensorCores both get work.
            tile_m = min(tile_m, _round_up(pl.cdiv(B, 2), 8))
        tile_m = min(tile_m, _round_up(B, 8))
    assert tile_m % 8 == 0

    num_tiles = pl.cdiv(B, tile_m)

    # Labels are tiny; no padding needed — garbage rows in the ragged last
    # block are neutralized by the in-kernel row mask.
    t = targets.astype(jnp.int32).reshape(B, 1)

    kernel = functools.partial(
        _ce_label_smooth_kernel,
        epsilon=float(epsilon),
        num_classes=int(num_classes),
        batch=int(B),
        tile_m=int(tile_m),
    )

    partials = pl.pallas_call(
        kernel,
        out_shape=jax.ShapeDtypeStruct((num_tiles, 8, 128), jnp.float32),
        grid_spec=pltpu.PrefetchScalarGridSpec(
            num_scalar_prefetch=0,
            grid=(num_tiles,),
            in_specs=[
                pl.BlockSpec((tile_m, C), lambda i: (i, 0)),   # logits tile
                pl.BlockSpec((tile_m, 1), lambda i: (i, 0)),   # labels tile
            ],
            out_specs=pl.BlockSpec((1, 8, 128), lambda i: (i, 0, 0)),
        ),
        compiler_params=pltpu.CompilerParams(
            dimension_semantics=("parallel",),   # both v7x TCs split the batch
            vmem_limit_bytes=32 * 1024 * 1024,
        ),
    )(inputs, t)

    # Final reduction across tiles + the single /B (mean over batch).
    return jnp.sum(partials[:, 0, 0]) / B


def _reference(inputs, targets, num_classes, epsilon=0.1):
    log_probs = jax.nn.log_softmax(inputs.astype(jnp.float32), axis=1)
    onehot = jax.nn.one_hot(targets, num_classes, dtype=jnp.float32)
    smoothed = (1.0 - epsilon) * onehot + epsilon / num_classes
    return (-smoothed * log_probs).mean(0).sum()


if __name__ == "__main__":
    key = jax.random.PRNGKey(0)
    k1, k2, k3, k4 = jax.random.split(key, 4)

    # Case 1: small f32 case matching the module's usage (B=8, K=16).
    B1, K1 = 8, 16
    logits1 = jax.random.normal(k1, (B1, K1), dtype=jnp.float32)
    labels1 = jax.random.randint(k2, (B1,), 0, K1, dtype=jnp.int32)
    loss1 = jax.block_until_ready(
        cross_entropy_label_smooth(logits1, labels1, K1, epsilon=0.1))
    ref1 = _reference(logits1, labels1, K1, epsilon=0.1)
    assert jnp.allclose(loss1, ref1, rtol=1e-5, atol=1e-5), (loss1, ref1)

    # Case 2: multi-tile grid + ragged last block + non-128 class count, bf16 in.
    B2, K2 = 20, 200
    logits2 = jax.random.normal(k3, (B2, K2), dtype=jnp.float32).astype(jnp.bfloat16)
    labels2 = jax.random.randint(k4, (B2,), 0, K2, dtype=jnp.int32)
    loss2 = jax.block_until_ready(
        cross_entropy_label_smooth(logits2, labels2, K2, epsilon=0.1, tile_m=8))
    ref2 = _reference(logits2, labels2, K2, epsilon=0.1)
    assert jnp.allclose(loss2, ref2, rtol=1e-4, atol=1e-4), (loss2, ref2)

    # Case 3: auto-sized tile path (exercises the >=2-tile split for B>8).
    loss3 = jax.block_until_ready(
        cross_entropy_label_smooth(logits2, labels2, K2, epsilon=0.1))
    assert jnp.allclose(loss3, ref2, rtol=1e-4, atol=1e-4), (loss3, ref2)

    print("KERNEL_OK")
</pallas_src>

<mosaic_0001>
module attributes {stable_mosaic.version = 11 : i64} {
  func.func @_ce_label_smooth_kernel(%arg0: i32, %arg1: memref<8x16xf32, #tpu.memory_space<vmem>>, %arg2: memref<8x1xi32, #tpu.memory_space<vmem>>, %arg3: memref<1x8x128xf32, #tpu.memory_space<vmem>>) attributes {dimension_semantics = [#tpu.dimension_semantics<parallel>], iteration_bounds = array<i64: 1>, scalar_prefetch = 0 : i64, scratch_operands = 0 : i64, tpu.core_type = #tpu.core_type<tc>, window_params = [{transform_indices = @transform_0, window_bounds = array<i64: 8, 16>}, {transform_indices = @transform_1, window_bounds = array<i64: 8, 1>}, {transform_indices = @transform_2, window_bounds = array<i64: 1, 8, 128>}]} {
    %c0 = arith.constant 0 : index
    %c0_0 = arith.constant 0 : index
    %0 = vector.load %arg1[%c0, %c0_0] : memref<8x16xf32, #tpu.memory_space<vmem>>, vector<8x16xf32>
    %1 = tpu.iota {dimensions = array<i32: 0>} : vector<8x1xi32>
    %c8_i32 = arith.constant 8 : i32
    %2 = arith.muli %arg0, %c8_i32 : i32
    %3 = vector.broadcast %2 : i32 to vector<8x1xi32>
    %4 = arith.addi %1, %3 : vector<8x1xi32>
    %c8_i32_1 = arith.constant 8 : i32
    %5 = vector.broadcast %c8_i32_1 : i32 to vector<8x1xi32>
    %6 = arith.cmpi slt, %4, %5 : vector<8x1xi32>
    %cst = arith.constant dense<0xFF800000> : vector<8xf32>
    %7 = vector.multi_reduction <maximumf>, %0, %cst [1] : vector<8x16xf32> to vector<8xf32>
    %8 = vector.shape_cast %7 : vector<8xf32> to vector<8x1xf32>
    %9 = vector.broadcast %8 : vector<8x1xf32> to vector<8x16xf32>
    %10 = arith.subf %0, %9 : vector<8x16xf32>
    %11 = math.exp %10 : vector<8x16xf32>
    %cst_2 = arith.constant dense<0.000000e+00> : vector<8xf32>
    %12 = vector.multi_reduction <add>, %11, %cst_2 [1] : vector<8x16xf32> to vector<8xf32>
    %13 = vector.shape_cast %12 : vector<8xf32> to vector<8x1xf32>
    %14 = math.log %13 : vector<8x1xf32>
    %c0_3 = arith.constant 0 : index
    %c0_4 = arith.constant 0 : index
    %15 = vector.load %arg2[%c0_3, %c0_4] : memref<8x1xi32, #tpu.memory_space<vmem>>, vector<8x1xi32>
    %16 = tpu.iota {dimensions = array<i32: 1>} : vector<8x16xi32>
    %17 = vector.broadcast %15 : vector<8x1xi32> to vector<8x16xi32>
    %18 = arith.cmpi eq, %16, %17 : vector<8x16xi32>
    %cst_5 = arith.constant 0.000000e+00 : f32
    %19 = vector.broadcast %cst_5 : f32 to vector<8x16xf32>
    %20 = arith.select %18, %10, %19 : vector<8x16xi1>, vector<8x16xf32>
    %cst_6 = arith.constant dense<0.000000e+00> : vector<8xf32>
    %21 = vector.multi_reduction <add>, %20, %cst_6 [1] : vector<8x16xf32> to vector<8xf32>
    %22 = vector.shape_cast %21 : vector<8xf32> to vector<8x1xf32>
    %cst_7 = arith.constant dense<0.000000e+00> : vector<8xf32>
    %23 = vector.multi_reduction <add>, %10, %cst_7 [1] : vector<8x16xf32> to vector<8xf32>
    %24 = vector.shape_cast %23 : vector<8xf32> to vector<8x1xf32>
    %25 = arith.subf %22, %14 : vector<8x1xf32>
    %cst_8 = arith.constant 0.899999976 : f32
    %26 = vector.broadcast %cst_8 : f32 to vector<8x1xf32>
    %27 = arith.mulf %26, %25 : vector<8x1xf32>
    %cst_9 = arith.constant 1.600000e+01 : f32
    %28 = vector.broadcast %cst_9 : f32 to vector<8x1xf32>
    %29 = arith.mulf %28, %14 : vector<8x1xf32>
    %30 = arith.subf %24, %29 : vector<8x1xf32>
    %cst_10 = arith.constant 6.250000e-03 : f32
    %31 = vector.broadcast %cst_10 : f32 to vector<8x1xf32>
    %32 = arith.mulf %31, %30 : vector<8x1xf32>
    %33 = arith.addf %27, %32 : vector<8x1xf32>
    %cst_11 = arith.constant 0.000000e+00 : f32
    %34 = vector.broadcast %cst_11 : f32 to vector<8x1xf32>
    %35 = arith.subf %34, %33 : vector<8x1xf32>
    %cst_12 = arith.constant 0.000000e+00 : f32
    %36 = vector.broadcast %cst_12 : f32 to vector<8x1xf32>
    %37 = arith.select %6, %35, %36 : vector<8x1xi1>, vector<8x1xf32>
    %38 = vector.shape_cast %37 : vector<8x1xf32> to vector<1x8x1xf32>
    %cst_13 = arith.constant dense<0.000000e+00> : vector<1xf32>
    %39 = vector.multi_reduction <add>, %38, %cst_13 [1, 2] : vector<1x8x1xf32> to vector<1xf32>
    %40 = vector.shape_cast %39 : vector<1xf32> to vector<1x1x1xf32>
    %41 = vector.extract %40[0, 0, 0] : f32 from vector<1x1x1xf32>
    %42 = vector.broadcast %41 : f32 to vector<1x8x128xf32>
    %c0_14 = arith.constant 0 : index
    %c0_15 = arith.constant 0 : index
    %c0_16 = arith.constant 0 : index
    %43 = vector.load %arg3[%c0_14, %c0_15, %c0_16] : memref<1x8x128xf32, #tpu.memory_space<vmem>>, vector<1x8x128xf32>
    tpu.vector_store %arg3[%c0_14, %c0_15, %c0_16], %42 {strides = array<i32>} : memref<1x8x128xf32, #tpu.memory_space<vmem>>, vector<1x8x128xf32>,
    return
  }
  func.func @transform_0(%arg0: i32) -> (i32, i32) {
    %c0_i32 = arith.constant 0 : i32
    %c0_i32_0 = arith.constant 0 : i32
    return %arg0, %c0_i32 : i32, i32
  }
  func.func @transform_1(%arg0: i32) -> (i32, i32) {
    %c0_i32 = arith.constant 0 : i32
    %c0_i32_0 = arith.constant 0 : i32
    return %arg0, %c0_i32 : i32, i32
  }
  func.func @transform_2(%arg0: i32) -> (i32, i32, i32) {
    %c0_i32 = arith.constant 0 : i32
    %c0_i32_0 = arith.constant 0 : i32
    %c0_i32_1 = arith.constant 0 : i32
    return %arg0, %c0_i32, %c0_i32_0 : i32, i32, i32
  }
}

</mosaic_0001>

<llo_original>
// kernel: tpu_custom_call.1
$region0: #{tpu_custom_call.1}
  #allocation0 [shape = 'u32[]', space=smem, size = 0x4, offset = 0x4, fixed_abs, tag = 'smem constant byte address 0x4 - core index']
  #allocation1 [shape = 'u32[144,128]{1,0:T(1,128)}', space=vmem, size = 0x12000, scoped, tag = 'internal scratch']
  %s0 = inlined_call_operand.vmem [shape: f32[8,16], index: 0, kind: input, shape index: {}]
  %s1 = inlined_call_operand.vmem [shape: s32[8,1], index: 1, kind: input, shape index: {}]
  %s2 = inlined_call_operand.hbm [shape: f32[1,8,128], index: 2, kind: output, shape index: {}]
  %s3 = sld [smem:[#allocation0]]
  $region18: #{tpu_custom_call.1} parent=0
    _
  %s5 = ssub.s32 1, %s3
  %s6 = scalar_select 0, %s5, %s3
  $region1: #{tpu_custom_call.1} parent=0
    #allocation2 [shape = 'u8[4096]{0}', space=vmem, size = 0x1000, scoped, tag = 'output window, operand 0, single buffered']
    #allocation3 [shape = 's32[1]{0}', space=sflag, size = 0x4, scoped, tag = 'scoped memory for tpu_custom_call.1']
    %7 = vsyncpa [#allocation3], 0
    // Predicated region
    $region2: #{tpu_custom_call.1} parent=1 // pred_check
      _
    $region3: #{tpu_custom_call.1} parent=1 // pred_check_branch
      %9 = sbr.rel (0) target = $region5
    $region4: #{tpu_custom_call.1} parent=1 // pred_region
      _
    $region5: #{tpu_custom_call.1} parent=1 // pred_fallthru
      _
    // Predicated region
    $region6: #{tpu_custom_call.1} parent=1 // pred_check
      _
    $region7: #{tpu_custom_call.1} parent=1 // pred_check_branch
      %11 = sbr.rel (0) target = $region9
    $region8: #{tpu_custom_call.1} parent=1 // pred_region
      _
    $region9: #{tpu_custom_call.1} parent=1 // pred_fallthru
      _
    %v12 = vld [vmem:[%s0] sm:$0xff]
    %v13 = vlaneseq
    %v14 = vshrl.u32 %v13, 7
    %s15 = smul.u32 0, 8
    %v16 = vstv %s15
    %v17 = vadd.s32 %v14, %v16
    %vm18 = vcmp.lt.s32.totalorder %v17, 8
    %vm19 = vcmask 130048
    %v20 = vsel %vm19, %v12, -inf
    %21 = vmax.xlane.f32.xlu0 %v20
    %v22 = vpop.xlane.xlu0 %21
    %v23 = vsub.f32 %v12, %v22
    %v24 = vmul.f32 %v23, 1.442695
    %v25 = vpow.pop %v24
    %v26 = vsel %vm19, %v25, 0.0
    %27 = vadd.xlane.f32.xlu0 %v26
    %v28 = vpop.xlane.xlu0 %27
    %v29 = vlog2.pop %v28
    %v30 = vmul.f32 %v29, 0.6931472
    %v31 = vld [vmem:[%s1] sm:$0xff]
    %v32 = vlaneseq
    %v33 = vand.u32 %v32, 127
    %34 = vset.pattern.permute.xlu0 0
    %35 = vperm.xlu0 %34, %v31
    %v36 = vpop.permute.xlu0 %35
    %vm37 = vcmp.eq.s32.totalorder %v33, %v36
    %v38 = vsel %vm37, %v23, 0.0
    %v39 = vsel %vm19, %v38, 0.0
    %40 = vadd.xlane.f32.xlu0 %v39
    %v41 = vpop.xlane.xlu0 %40
    %v42 = vsel %vm19, %v23, 0.0
    %43 = vadd.xlane.f32.xlu0 %v42
    %v44 = vpop.xlane.xlu0 %43
    %v45 = vsub.f32 %v41, %v30
    %v46 = vmul.f32 %v45, 0.9
    %v47 = vmul.f32 %v30, 16.0
    %v48 = vsub.f32 %v44, %v47
    %v49 = vmul.f32 %v48, 0.00625
    %v50 = vadd.f32 %v46, %v49
    %v51 = vsub.f32 0.0, %v50
    %v52 = vsel %vm18, %v51, 0.0
    %vm53 = vcmask 7168
    %v54 = vsel %vm53, %v52, 0.0
    %55 = vadd.xlane.f32.xlu0 %v54
    %v56 = vpop.xlane.xlu0 %55
    %v57 = vrot.slane %v56, 4
    %v58 = vadd.f32 %v56, %v57
    %v59 = vrot.slane %v58, 2
    %v60 = vadd.f32 %v58, %v59
    %v61 = vrot.slane %v60, 1
    %v62 = vadd.f32 %v60, %v61
    %s63 = vtos %v62
    %v64 = vstv %s63
    %65 = vst [vmem:[#allocation2] sm:$0xff] %v64
    // Predicated region
    $region10: #{tpu_custom_call.1} parent=1 // pred_check
      _
    $region11: #{tpu_custom_call.1} parent=1 // pred_check_branch
      %67 = sbr.rel (0) target = $region13
    $region12: #{tpu_custom_call.1} parent=1 // pred_region
      %s69 = ssub.s32 128, 128
      %70 = vsyncadd [#allocation3], %s69
      %s72 = sshll.u32 [#allocation2], 4
      %s73 = int_to_ptr.vmem [resolvable:$true] %s72
      %75 = dma.vmem_to_hbm [thread:$0]  %s73, 128, %s2, [#allocation3]
    $region13: #{tpu_custom_call.1} parent=1 // pred_fallthru
      _
    // Predicated region
    $region14: #{tpu_custom_call.1} parent=1 // pred_check
      _
    $region15: #{tpu_custom_call.1} parent=1 // pred_check_branch
      %77 = sbr.rel (0) target = $region17
    $region16: #{tpu_custom_call.1} parent=1 // pred_region
      %78 = dma.done [#allocation3], 128
    $region17: #{tpu_custom_call.1} parent=1 // pred_fallthru
      _
    %79 = vsyncpa [#allocation3], 1

</llo_original>
